<compile_context>
chip_gen: v5e
topology: v5e:2x2
jax: 0.10.0
libtpu: 0.0.40
codegen_flags: <defaults>
</compile_context>

<pallas_src>
import functools

import jax
import jax.numpy as jnp
import numpy as np
from jax.experimental import pallas as pl
from jax.experimental.pallas import tpu as pltpu

MATMUL_DTYPE = jnp.bfloat16   # MXU operand dtype; accumulation stays f32
LANE = 128
SUBLANE = 8


def _round_up(x, m):
    return ((x + m - 1) // m) * m


def decoder_kernel(z_ref, w_in_ref, b_in_ref, w_ih_ref, b_gates_ref,
                   w_hh_ref, w_out_ref, b_out_ref, y_ref, hs_ref, *,
                   hidden_size, max_length, out_width):
    H = hidden_size
    B = z_ref.shape[0]           # padded batch tile
    T = max_length
    O_pad = out_width

    # ---- hoisted, once per batch tile --------------------------------------
    # linear_in + ReLU (bf16 MXU operands, f32 accumulation / pointwise).
    x = jnp.maximum(
        jnp.dot(z_ref[...], w_in_ref[...], preferred_element_type=jnp.float32)
        + b_in_ref[...], 0.0)
    # LSTM input contribution is constant over time (same x every step); both
    # biases AND the 0.5 sigmoid->tanh pre-scale are already folded into the
    # packed w_ih / b_gates / w_hh, so no per-step scaling is needed.
    gx = jnp.dot(x.astype(w_ih_ref.dtype), w_ih_ref[...],
                 preferred_element_type=jnp.float32) + b_gates_ref[...]

    w_hh = w_hh_ref[...]         # i/f/o column blocks pre-scaled by 0.5

    h = jnp.zeros((B, H), jnp.float32)
    c = jnp.zeros((B, H), jnp.float32)

    # ---- recurrence, fully unrolled (static trip count) ---------------------
    for t in range(T):
        if t == 0:
            tg = jnp.tanh(gx)                            # h0 == 0
        else:
            tg = jnp.tanh(gx + jnp.dot(h.astype(w_hh.dtype), w_hh,
                                       preferred_element_type=jnp.float32))
        # Single EUP pass over all 4H lanes; sigmoid recovered per gate with a
        # scalar-literal affine (0.5*t + 0.5), g block is raw tanh.
        i = 0.5 * tg[:, 0 * H:1 * H] + 0.5   # PyTorch gate order: input
        f = 0.5 * tg[:, 1 * H:2 * H] + 0.5   # forget
        g = tg[:, 2 * H:3 * H]               # cell (g) — unscaled tanh
        o = 0.5 * tg[:, 3 * H:4 * H] + 0.5   # output
        c = f * c + i * g
        h = o * jnp.tanh(c)
        # Stash relu(h_t) in bf16 (output path only; recurrence uses raw h).
        hs_ref[t * B:(t + 1) * B, :] = jnp.maximum(h, 0.0).astype(hs_ref.dtype)

    # ---- epilogue: one batched projection, batch-first lane-aligned stores --
    y = jnp.dot(hs_ref[...], w_out_ref[...],
                preferred_element_type=jnp.float32) + b_out_ref[...]
    # y is (T*B, O_pad) time-major; emit batch-first (B, T*O_pad) with T
    # full-vreg stores at lane offsets that are multiples of 128.
    for t in range(T):
        y_ref[:, t * O_pad:(t + 1) * O_pad] = \
            y[t * B:(t + 1) * B, :].astype(y_ref.dtype)


def pack_params(params):
    """One-time parameter prep (bf16 casts, lane padding, bias fold, pre-scale).

    Folds sigmoid(x) = 0.5*tanh(0.5*x) + 0.5 into the parameters: the i/f/o
    column blocks of w_ih, w_hh and the combined gate bias are scaled by 0.5
    (exact in bf16/f32 — power-of-two), so the kernel needs a single tanh per
    step over all 4H gate lanes.
    """
    H = params["w_in"].shape[1]
    O = params["w_out"].shape[1]
    O_pad = _round_up(O, LANE)
    mm = MATMUL_DTYPE

    col = np.arange(4 * H)
    pre = np.where((col >= 2 * H) & (col < 3 * H), 1.0, 0.5).astype(np.float32)

    b_gates = ((params["b_ih"] + params["b_hh"]) * pre).reshape(1, 4 * H)
    w_ih = params["w_ih"] * pre              # column scale (H, 4H)
    w_hh = params["w_hh"] * pre

    w_out = jnp.zeros((H, O_pad), jnp.float32).at[:, :O].set(params["w_out"])
    b_out = jnp.zeros((1, O_pad), jnp.float32).at[0, :O].set(params["b_out"])

    return {
        "w_in": params["w_in"].astype(mm),
        "b_in": params["b_in"].reshape(1, H).astype(jnp.float32),
        "w_ih": w_ih.astype(mm),
        "b_gates": b_gates.astype(jnp.float32),
        "w_hh": w_hh.astype(mm),
        "w_out": w_out.astype(mm),
        "b_out": b_out,
        "H": int(H), "O": int(O), "O_pad": int(O_pad),
        "I": int(params["w_in"].shape[0]),
    }


def decoder_forward(z, packed, max_length):
    B, I = z.shape
    H, O, O_pad = packed["H"], packed["O"], packed["O_pad"]
    T = max_length

    # Batch tiling: single tile when latency-bound (small batch); >=2 tiles
    # once batch permits so v7x's second TensorCore gets work on the
    # "parallel" grid axis; 256-wide M tiles to fill v6e/v7x's MXU when huge.
    B_pad0 = max(_round_up(B, SUBLANE), SUBLANE)
    if B_pad0 >= 512:
        B_tile = 256
    elif B_pad0 >= 256:
        B_tile = 128
    else:
        B_tile = B_pad0
    B_pad = _round_up(B_pad0, B_tile)
    n_tiles = B_pad // B_tile

    z_pad = jnp.zeros((B_pad, I), MATMUL_DTYPE).at[:B].set(
        z.astype(MATMUL_DTYPE))

    args = (
        z_pad,
        packed["w_in"], packed["b_in"],
        packed["w_ih"], packed["b_gates"],
        packed["w_hh"],
        packed["w_out"], packed["b_out"],
    )

    in_specs = [
        pl.BlockSpec((B_tile, I), lambda b: (b, 0)),       # z (batch-tiled)
        pl.BlockSpec((I, H), lambda b: (0, 0)),            # w_in
        pl.BlockSpec((1, H), lambda b: (0, 0)),            # b_in
        pl.BlockSpec((H, 4 * H), lambda b: (0, 0)),        # w_ih (pre-scaled)
        pl.BlockSpec((1, 4 * H), lambda b: (0, 0)),        # b_ih+b_hh (scaled)
        pl.BlockSpec((H, 4 * H), lambda b: (0, 0)),        # w_hh (pre-scaled)
        pl.BlockSpec((H, O_pad), lambda b: (0, 0)),        # w_out (lane-padded)
        pl.BlockSpec((1, O_pad), lambda b: (0, 0)),        # b_out (lane-padded)
    ]
    out_specs = pl.BlockSpec((B_tile, T * O_pad), lambda b: (b, 0))

    # Advisory cost hint for XLA scheduling around the custom call.
    flops = n_tiles * (
        2 * B_tile * I * H
        + 2 * B_tile * H * 4 * H
        + (T - 1) * 2 * B_tile * H * 4 * H
        + 2 * T * B_tile * H * O_pad
        + T * B_tile * 16 * H)
    transcendentals = n_tiles * T * B_tile * 5 * H
    bytes_accessed = (sum(int(a.size) * a.dtype.itemsize for a in args)
                      + B_pad * T * O_pad * 4)

    kernel = functools.partial(decoder_kernel, hidden_size=H,
                               max_length=T, out_width=O_pad)

    y_flat = pl.pallas_call(
        kernel,
        out_shape=jax.ShapeDtypeStruct((B_pad, T * O_pad), jnp.float32),
        grid=(n_tiles,),
        in_specs=in_specs,
        out_specs=out_specs,
        scratch_shapes=[pltpu.VMEM((T * B_tile, H), jnp.bfloat16)],
        compiler_params=pltpu.CompilerParams(
            dimension_semantics=("parallel",)),
        cost_estimate=pl.CostEstimate(
            flops=int(flops),
            transcendentals=int(transcendentals),
            bytes_accessed=int(bytes_accessed)),
    )(*args)

    # Batch-first already; splitting the packed time axis is a free reshape.
    # Strip batch/lane padding.
    return y_flat.reshape(B_pad, T, O_pad)[:B, :, :O]


def decoder_reference(z, params, max_length):
    """Pure-JAX reference mirroring the PyTorch forward pass.

    Uses the same bf16 MXU-operand rounding as the kernel (f32 accumulation and
    f32 pointwise math) so the comparison is tight.
    """
    H = params["w_in"].shape[1]
    mm = MATMUL_DTYPE

    def dot(a, b):
        return jnp.dot(a.astype(mm), b.astype(mm),
                       preferred_element_type=jnp.float32)

    x = jnp.maximum(dot(z, params["w_in"]) + params["b_in"], 0.0)
    gx = dot(x, params["w_ih"]) + params["b_ih"] + params["b_hh"]
    h = jnp.zeros((z.shape[0], H), jnp.float32)
    c = jnp.zeros_like(h)
    outs = []
    for _ in range(max_length):
        gates = gx + dot(h, params["w_hh"])
        i = jax.nn.sigmoid(gates[:, 0 * H:1 * H])
        f = jax.nn.sigmoid(gates[:, 1 * H:2 * H])
        g = jnp.tanh(gates[:, 2 * H:3 * H])
        o = jax.nn.sigmoid(gates[:, 3 * H:4 * H])
        c = f * c + i * g
        h = o * jnp.tanh(c)
        outs.append(dot(jnp.maximum(h, 0.0), params["w_out"]) + params["b_out"])
    return jnp.stack(outs, axis=1)


def init_params(key, input_size, hidden_size, output_size):
    """Deterministic synthetic parameters (shapes match the nn.Module)."""
    ks = jax.random.split(key, 8)

    def init(k, shape, fan_in):
        return (jax.random.normal(k, shape, jnp.float32)
                / jnp.sqrt(jnp.float32(fan_in)))

    return {
        # nn.Linear(input_size, hidden_size): weight (H, I) -> stored (I, H)
        "w_in": init(ks[0], (input_size, hidden_size), input_size),
        "b_in": init(ks[1], (hidden_size,), input_size),
        # nn.LSTM(H, H): weight_ih (4H, H) -> stored (H, 4H); same for hh
        "w_ih": init(ks[2], (hidden_size, 4 * hidden_size), hidden_size),
        "w_hh": init(ks[3], (hidden_size, 4 * hidden_size), hidden_size),
        "b_ih": init(ks[4], (4 * hidden_size,), hidden_size),
        "b_hh": init(ks[5], (4 * hidden_size,), hidden_size),
        # nn.Linear(hidden_size, output_size): weight (O, H) -> stored (H, O)
        "w_out": init(ks[6], (hidden_size, output_size), hidden_size),
        "b_out": init(ks[7], (output_size,), hidden_size),
    }


if __name__ == "__main__":
    batch = 4
    input_size = 16      # latent z dim
    hidden_size = 32     # 4H = 128 -> gates fill one vreg lane dim
    output_size = 24     # number of grammar rules
    max_length = 8

    key = jax.random.PRNGKey(0)
    k_params, k_z = jax.random.split(key)
    params = init_params(k_params, input_size, hidden_size, output_size)
    z = jax.random.normal(k_z, (batch, input_size), jnp.float32)

    packed = pack_params(params)          # one-time parameter prep (hoisted)
    y = decoder_forward(z, packed, max_length)
    y = jax.block_until_ready(y)

    y_ref = jax.block_until_ready(decoder_reference(z, params, max_length))

    assert y.shape == (batch, max_length, output_size), y.shape
    np.testing.assert_allclose(np.asarray(y), np.asarray(y_ref),
                               rtol=1e-2, atol=1e-2)
    print("KERNEL_OK")
</pallas_src>

<mosaic_0001>
module attributes {stable_mosaic.version = 11 : i64} {
  func.func @decoder_kernel(%arg0: i32, %arg1: memref<8x16xbf16, #tpu.memory_space<vmem>>, %arg2: memref<16x32xbf16, #tpu.memory_space<vmem>>, %arg3: memref<1x32xf32, #tpu.memory_space<vmem>>, %arg4: memref<32x128xbf16, #tpu.memory_space<vmem>>, %arg5: memref<1x128xf32, #tpu.memory_space<vmem>>, %arg6: memref<32x128xbf16, #tpu.memory_space<vmem>>, %arg7: memref<32x128xbf16, #tpu.memory_space<vmem>>, %arg8: memref<1x128xf32, #tpu.memory_space<vmem>>, %arg9: memref<8x1024xf32, #tpu.memory_space<vmem>>, %arg10: memref<64x32xbf16, #tpu.memory_space<vmem>>) attributes {dimension_semantics = [#tpu.dimension_semantics<parallel>], iteration_bounds = array<i64: 1>, scalar_prefetch = 0 : i64, scratch_operands = 1 : i64, tpu.core_type = #tpu.core_type<tc>, window_params = [{transform_indices = @transform_0, window_bounds = array<i64: 8, 16>}, {pipeline_mode = #tpu.pipeline_mode<synchronous>, transform_indices = @transform_1, window_bounds = array<i64: 16, 32>}, {pipeline_mode = #tpu.pipeline_mode<synchronous>, transform_indices = @transform_2, window_bounds = array<i64: 1, 32>}, {pipeline_mode = #tpu.pipeline_mode<synchronous>, transform_indices = @transform_3, window_bounds = array<i64: 32, 128>}, {pipeline_mode = #tpu.pipeline_mode<synchronous>, transform_indices = @transform_4, window_bounds = array<i64: 1, 128>}, {pipeline_mode = #tpu.pipeline_mode<synchronous>, transform_indices = @transform_5, window_bounds = array<i64: 32, 128>}, {pipeline_mode = #tpu.pipeline_mode<synchronous>, transform_indices = @transform_6, window_bounds = array<i64: 32, 128>}, {pipeline_mode = #tpu.pipeline_mode<synchronous>, transform_indices = @transform_7, window_bounds = array<i64: 1, 128>}, {transform_indices = @transform_8, window_bounds = array<i64: 8, 1024>}]} {
    %c0 = arith.constant 0 : index
    %c0_0 = arith.constant 0 : index
    %0 = vector.load %arg1[%c0, %c0_0] : memref<8x16xbf16, #tpu.memory_space<vmem>>, vector<8x16xbf16>
    %c0_1 = arith.constant 0 : index
    %c0_2 = arith.constant 0 : index
    %1 = vector.load %arg2[%c0_1, %c0_2] : memref<16x32xbf16, #tpu.memory_space<vmem>>, vector<16x32xbf16>
    %cst = arith.constant dense<0.000000e+00> : vector<8x32xf32>
    %2 = tpu.matmul %0, %1, %cst {dimension_numbers = #tpu.dot_dimension_numbers<[1], [0], [0], [1], [0, 0, 1, 1], [], []>} : vector<8x16xbf16>, vector<16x32xbf16>, vector<8x32xf32> -> vector<8x32xf32>
    %c0_3 = arith.constant 0 : index
    %c0_4 = arith.constant 0 : index
    %3 = vector.load %arg3[%c0_3, %c0_4] : memref<1x32xf32, #tpu.memory_space<vmem>>, vector<1x32xf32>
    %4 = vector.broadcast %3 : vector<1x32xf32> to vector<8x32xf32>
    %5 = arith.addf %2, %4 : vector<8x32xf32>
    %cst_5 = arith.constant 0.000000e+00 : f32
    %6 = vector.broadcast %cst_5 : f32 to vector<8x32xf32>
    %7 = arith.maximumf %5, %6 : vector<8x32xf32>
    %8 = arith.truncf %7 : vector<8x32xf32> to vector<8x32xbf16>
    %c0_6 = arith.constant 0 : index
    %c0_7 = arith.constant 0 : index
    %9 = vector.load %arg4[%c0_6, %c0_7] : memref<32x128xbf16, #tpu.memory_space<vmem>>, vector<32x128xbf16>
    %cst_8 = arith.constant dense<0.000000e+00> : vector<8x128xf32>
    %10 = tpu.matmul %8, %9, %cst_8 {dimension_numbers = #tpu.dot_dimension_numbers<[1], [0], [0], [1], [0, 0, 1, 1], [], []>} : vector<8x32xbf16>, vector<32x128xbf16>, vector<8x128xf32> -> vector<8x128xf32>
    %c0_9 = arith.constant 0 : index
    %c0_10 = arith.constant 0 : index
    %11 = vector.load %arg5[%c0_9, %c0_10] : memref<1x128xf32, #tpu.memory_space<vmem>>, vector<1x128xf32>
    %12 = vector.broadcast %11 : vector<1x128xf32> to vector<8x128xf32>
    %13 = arith.addf %10, %12 : vector<8x128xf32>
    %c0_11 = arith.constant 0 : index
    %c0_12 = arith.constant 0 : index
    %14 = vector.load %arg6[%c0_11, %c0_12] : memref<32x128xbf16, #tpu.memory_space<vmem>>, vector<32x128xbf16>
    %cst_13 = arith.constant 0.000000e+00 : f32
    %15 = vector.broadcast %cst_13 : f32 to vector<8x32xf32>
    %16 = math.tanh %13 : vector<8x128xf32>
    %17 = vector.extract_strided_slice %16 {offsets = [0, 0], sizes = [8, 32], strides = [1, 1]} : vector<8x128xf32> to vector<8x32xf32>
    %cst_14 = arith.constant 5.000000e-01 : f32
    %18 = vector.broadcast %cst_14 : f32 to vector<8x32xf32>
    %19 = arith.mulf %18, %17 : vector<8x32xf32>
    %cst_15 = arith.constant 5.000000e-01 : f32
    %20 = vector.broadcast %cst_15 : f32 to vector<8x32xf32>
    %21 = arith.addf %19, %20 : vector<8x32xf32>
    %22 = vector.extract_strided_slice %16 {offsets = [0, 32], sizes = [8, 32], strides = [1, 1]} : vector<8x128xf32> to vector<8x32xf32>
    %cst_16 = arith.constant 5.000000e-01 : f32
    %23 = vector.broadcast %cst_16 : f32 to vector<8x32xf32>
    %24 = arith.mulf %23, %22 : vector<8x32xf32>
    %cst_17 = arith.constant 5.000000e-01 : f32
    %25 = vector.broadcast %cst_17 : f32 to vector<8x32xf32>
    %26 = arith.addf %24, %25 : vector<8x32xf32>
    %27 = vector.extract_strided_slice %16 {offsets = [0, 64], sizes = [8, 32], strides = [1, 1]} : vector<8x128xf32> to vector<8x32xf32>
    %28 = vector.extract_strided_slice %16 {offsets = [0, 96], sizes = [8, 32], strides = [1, 1]} : vector<8x128xf32> to vector<8x32xf32>
    %cst_18 = arith.constant 5.000000e-01 : f32
    %29 = vector.broadcast %cst_18 : f32 to vector<8x32xf32>
    %30 = arith.mulf %29, %28 : vector<8x32xf32>
    %cst_19 = arith.constant 5.000000e-01 : f32
    %31 = vector.broadcast %cst_19 : f32 to vector<8x32xf32>
    %32 = arith.addf %30, %31 : vector<8x32xf32>
    %33 = arith.mulf %26, %15 : vector<8x32xf32>
    %34 = arith.mulf %21, %27 : vector<8x32xf32>
    %35 = arith.addf %33, %34 : vector<8x32xf32>
    %36 = math.tanh %35 : vector<8x32xf32>
    %37 = arith.mulf %32, %36 : vector<8x32xf32>
    %cst_20 = arith.constant 0.000000e+00 : f32
    %38 = vector.broadcast %cst_20 : f32 to vector<8x32xf32>
    %39 = arith.maximumf %37, %38 : vector<8x32xf32>
    %40 = arith.truncf %39 : vector<8x32xf32> to vector<8x32xbf16>
    %c0_21 = arith.constant 0 : index
    %c0_22 = arith.constant 0 : index
    %41 = vector.load %arg10[%c0_21, %c0_22] : memref<64x32xbf16, #tpu.memory_space<vmem>>, vector<8x32xbf16>
    tpu.vector_store %arg10[%c0_21, %c0_22], %40 {strides = array<i32>} : memref<64x32xbf16, #tpu.memory_space<vmem>>, vector<8x32xbf16>,
    %42 = arith.truncf %37 : vector<8x32xf32> to vector<8x32xbf16>
    %cst_23 = arith.constant dense<0.000000e+00> : vector<8x128xf32>
    %43 = tpu.matmul %42, %14, %cst_23 {dimension_numbers = #tpu.dot_dimension_numbers<[1], [0], [0], [1], [0, 0, 1, 1], [], []>} : vector<8x32xbf16>, vector<32x128xbf16>, vector<8x128xf32> -> vector<8x128xf32>
    %44 = arith.addf %13, %43 : vector<8x128xf32>
    %45 = math.tanh %44 : vector<8x128xf32>
    %46 = vector.extract_strided_slice %45 {offsets = [0, 0], sizes = [8, 32], strides = [1, 1]} : vector<8x128xf32> to vector<8x32xf32>
    %cst_24 = arith.constant 5.000000e-01 : f32
    %47 = vector.broadcast %cst_24 : f32 to vector<8x32xf32>
    %48 = arith.mulf %47, %46 : vector<8x32xf32>
    %cst_25 = arith.constant 5.000000e-01 : f32
    %49 = vector.broadcast %cst_25 : f32 to vector<8x32xf32>
    %50 = arith.addf %48, %49 : vector<8x32xf32>
    %51 = vector.extract_strided_slice %45 {offsets = [0, 32], sizes = [8, 32], strides = [1, 1]} : vector<8x128xf32> to vector<8x32xf32>
    %cst_26 = arith.constant 5.000000e-01 : f32
    %52 = vector.broadcast %cst_26 : f32 to vector<8x32xf32>
    %53 = arith.mulf %52, %51 : vector<8x32xf32>
    %cst_27 = arith.constant 5.000000e-01 : f32
    %54 = vector.broadcast %cst_27 : f32 to vector<8x32xf32>
    %55 = arith.addf %53, %54 : vector<8x32xf32>
    %56 = vector.extract_strided_slice %45 {offsets = [0, 64], sizes = [8, 32], strides = [1, 1]} : vector<8x128xf32> to vector<8x32xf32>
    %57 = vector.extract_strided_slice %45 {offsets = [0, 96], sizes = [8, 32], strides = [1, 1]} : vector<8x128xf32> to vector<8x32xf32>
    %cst_28 = arith.constant 5.000000e-01 : f32
    %58 = vector.broadcast %cst_28 : f32 to vector<8x32xf32>
    %59 = arith.mulf %58, %57 : vector<8x32xf32>
    %cst_29 = arith.constant 5.000000e-01 : f32
    %60 = vector.broadcast %cst_29 : f32 to vector<8x32xf32>
    %61 = arith.addf %59, %60 : vector<8x32xf32>
    %62 = arith.mulf %55, %35 : vector<8x32xf32>
    %63 = arith.mulf %50, %56 : vector<8x32xf32>
    %64 = arith.addf %62, %63 : vector<8x32xf32>
    %65 = math.tanh %64 : vector<8x32xf32>
    %66 = arith.mulf %61, %65 : vector<8x32xf32>
    %cst_30 = arith.constant 0.000000e+00 : f32
    %67 = vector.broadcast %cst_30 : f32 to vector<8x32xf32>
    %68 = arith.maximumf %66, %67 : vector<8x32xf32>
    %69 = arith.truncf %68 : vector<8x32xf32> to vector<8x32xbf16>
    %c8 = arith.constant 8 : index
    %c0_31 = arith.constant 0 : index
    %70 = vector.load %arg10[%c8, %c0_31] : memref<64x32xbf16, #tpu.memory_space<vmem>>, vector<8x32xbf16>
    tpu.vector_store %arg10[%c8, %c0_31], %69 {strides = array<i32>} : memref<64x32xbf16, #tpu.memory_space<vmem>>, vector<8x32xbf16>,
    %71 = arith.truncf %66 : vector<8x32xf32> to vector<8x32xbf16>
    %cst_32 = arith.constant dense<0.000000e+00> : vector<8x128xf32>
    %72 = tpu.matmul %71, %14, %cst_32 {dimension_numbers = #tpu.dot_dimension_numbers<[1], [0], [0], [1], [0, 0, 1, 1], [], []>} : vector<8x32xbf16>, vector<32x128xbf16>, vector<8x128xf32> -> vector<8x128xf32>
    %73 = arith.addf %13, %72 : vector<8x128xf32>
    %74 = math.tanh %73 : vector<8x128xf32>
    %75 = vector.extract_strided_slice %74 {offsets = [0, 0], sizes = [8, 32], strides = [1, 1]} : vector<8x128xf32> to vector<8x32xf32>
    %cst_33 = arith.constant 5.000000e-01 : f32
    %76 = vector.broadcast %cst_33 : f32 to vector<8x32xf32>
    %77 = arith.mulf %76, %75 : vector<8x32xf32>
    %cst_34 = arith.constant 5.000000e-01 : f32
    %78 = vector.broadcast %cst_34 : f32 to vector<8x32xf32>
    %79 = arith.addf %77, %78 : vector<8x32xf32>
    %80 = vector.extract_strided_slice %74 {offsets = [0, 32], sizes = [8, 32], strides = [1, 1]} : vector<8x128xf32> to vector<8x32xf32>
    %cst_35 = arith.constant 5.000000e-01 : f32
    %81 = vector.broadcast %cst_35 : f32 to vector<8x32xf32>
    %82 = arith.mulf %81, %80 : vector<8x32xf32>
    %cst_36 = arith.constant 5.000000e-01 : f32
    %83 = vector.broadcast %cst_36 : f32 to vector<8x32xf32>
    %84 = arith.addf %82, %83 : vector<8x32xf32>
    %85 = vector.extract_strided_slice %74 {offsets = [0, 64], sizes = [8, 32], strides = [1, 1]} : vector<8x128xf32> to vector<8x32xf32>
    %86 = vector.extract_strided_slice %74 {offsets = [0, 96], sizes = [8, 32], strides = [1, 1]} : vector<8x128xf32> to vector<8x32xf32>
    %cst_37 = arith.constant 5.000000e-01 : f32
    %87 = vector.broadcast %cst_37 : f32 to vector<8x32xf32>
    %88 = arith.mulf %87, %86 : vector<8x32xf32>
    %cst_38 = arith.constant 5.000000e-01 : f32
    %89 = vector.broadcast %cst_38 : f32 to vector<8x32xf32>
    %90 = arith.addf %88, %89 : vector<8x32xf32>
    %91 = arith.mulf %84, %64 : vector<8x32xf32>
    %92 = arith.mulf %79, %85 : vector<8x32xf32>
    %93 = arith.addf %91, %92 : vector<8x32xf32>
    %94 = math.tanh %93 : vector<8x32xf32>
    %95 = arith.mulf %90, %94 : vector<8x32xf32>
    %cst_39 = arith.constant 0.000000e+00 : f32
    %96 = vector.broadcast %cst_39 : f32 to vector<8x32xf32>
    %97 = arith.maximumf %95, %96 : vector<8x32xf32>
    %98 = arith.truncf %97 : vector<8x32xf32> to vector<8x32xbf16>
    %c16 = arith.constant 16 : index
    %c0_40 = arith.constant 0 : index
    %99 = vector.load %arg10[%c16, %c0_40] : memref<64x32xbf16, #tpu.memory_space<vmem>>, vector<8x32xbf16>
    tpu.vector_store %arg10[%c16, %c0_40], %98 {strides = array<i32>} : memref<64x32xbf16, #tpu.memory_space<vmem>>, vector<8x32xbf16>,
    %100 = arith.truncf %95 : vector<8x32xf32> to vector<8x32xbf16>
    %cst_41 = arith.constant dense<0.000000e+00> : vector<8x128xf32>
    %101 = tpu.matmul %100, %14, %cst_41 {dimension_numbers = #tpu.dot_dimension_numbers<[1], [0], [0], [1], [0, 0, 1, 1], [], []>} : vector<8x32xbf16>, vector<32x128xbf16>, vector<8x128xf32> -> vector<8x128xf32>
    %102 = arith.addf %13, %101 : vector<8x128xf32>
    %103 = math.tanh %102 : vector<8x128xf32>
    %104 = vector.extract_strided_slice %103 {offsets = [0, 0], sizes = [8, 32], strides = [1, 1]} : vector<8x128xf32> to vector<8x32xf32>
    %cst_42 = arith.constant 5.000000e-01 : f32
    %105 = vector.broadcast %cst_42 : f32 to vector<8x32xf32>
    %106 = arith.mulf %105, %104 : vector<8x32xf32>
    %cst_43 = arith.constant 5.000000e-01 : f32
    %107 = vector.broadcast %cst_43 : f32 to vector<8x32xf32>
    %108 = arith.addf %106, %107 : vector<8x32xf32>
    %109 = vector.extract_strided_slice %103 {offsets = [0, 32], sizes = [8, 32], strides = [1, 1]} : vector<8x128xf32> to vector<8x32xf32>
    %cst_44 = arith.constant 5.000000e-01 : f32
    %110 = vector.broadcast %cst_44 : f32 to vector<8x32xf32>
    %111 = arith.mulf %110, %109 : vector<8x32xf32>
    %cst_45 = arith.constant 5.000000e-01 : f32
    %112 = vector.broadcast %cst_45 : f32 to vector<8x32xf32>
    %113 = arith.addf %111, %112 : vector<8x32xf32>
    %114 = vector.extract_strided_slice %103 {offsets = [0, 64], sizes = [8, 32], strides = [1, 1]} : vector<8x128xf32> to vector<8x32xf32>
    %115 = vector.extract_strided_slice %103 {offsets = [0, 96], sizes = [8, 32], strides = [1, 1]} : vector<8x128xf32> to vector<8x32xf32>
    %cst_46 = arith.constant 5.000000e-01 : f32
    %116 = vector.broadcast %cst_46 : f32 to vector<8x32xf32>
    %117 = arith.mulf %116, %115 : vector<8x32xf32>
    %cst_47 = arith.constant 5.000000e-01 : f32
    %118 = vector.broadcast %cst_47 : f32 to vector<8x32xf32>
    %119 = arith.addf %117, %118 : vector<8x32xf32>
    %120 = arith.mulf %113, %93 : vector<8x32xf32>
    %121 = arith.mulf %108, %114 : vector<8x32xf32>
    %122 = arith.addf %120, %121 : vector<8x32xf32>
    %123 = math.tanh %122 : vector<8x32xf32>
    %124 = arith.mulf %119, %123 : vector<8x32xf32>
    %cst_48 = arith.constant 0.000000e+00 : f32
    %125 = vector.broadcast %cst_48 : f32 to vector<8x32xf32>
    %126 = arith.maximumf %124, %125 : vector<8x32xf32>
    %127 = arith.truncf %126 : vector<8x32xf32> to vector<8x32xbf16>
    %c24 = arith.constant 24 : index
    %c0_49 = arith.constant 0 : index
    %128 = vector.load %arg10[%c24, %c0_49] : memref<64x32xbf16, #tpu.memory_space<vmem>>, vector<8x32xbf16>
    tpu.vector_store %arg10[%c24, %c0_49], %127 {strides = array<i32>} : memref<64x32xbf16, #tpu.memory_space<vmem>>, vector<8x32xbf16>,
    %129 = arith.truncf %124 : vector<8x32xf32> to vector<8x32xbf16>
    %cst_50 = arith.constant dense<0.000000e+00> : vector<8x128xf32>
    %130 = tpu.matmul %129, %14, %cst_50 {dimension_numbers = #tpu.dot_dimension_numbers<[1], [0], [0], [1], [0, 0, 1, 1], [], []>} : vector<8x32xbf16>, vector<32x128xbf16>, vector<8x128xf32> -> vector<8x128xf32>
    %131 = arith.addf %13, %130 : vector<8x128xf32>
    %132 = math.tanh %131 : vector<8x128xf32>
    %133 = vector.extract_strided_slice %132 {offsets = [0, 0], sizes = [8, 32], strides = [1, 1]} : vector<8x128xf32> to vector<8x32xf32>
    %cst_51 = arith.constant 5.000000e-01 : f32
    %134 = vector.broadcast %cst_51 : f32 to vector<8x32xf32>
    %135 = arith.mulf %134, %133 : vector<8x32xf32>
    %cst_52 = arith.constant 5.000000e-01 : f32
    %136 = vector.broadcast %cst_52 : f32 to vector<8x32xf32>
    %137 = arith.addf %135, %136 : vector<8x32xf32>
    %138 = vector.extract_strided_slice %132 {offsets = [0, 32], sizes = [8, 32], strides = [1, 1]} : vector<8x128xf32> to vector<8x32xf32>
    %cst_53 = arith.constant 5.000000e-01 : f32
    %139 = vector.broadcast %cst_53 : f32 to vector<8x32xf32>
    %140 = arith.mulf %139, %138 : vector<8x32xf32>
    %cst_54 = arith.constant 5.000000e-01 : f32
    %141 = vector.broadcast %cst_54 : f32 to vector<8x32xf32>
    %142 = arith.addf %140, %141 : vector<8x32xf32>
    %143 = vector.extract_strided_slice %132 {offsets = [0, 64], sizes = [8, 32], strides = [1, 1]} : vector<8x128xf32> to vector<8x32xf32>
    %144 = vector.extract_strided_slice %132 {offsets = [0, 96], sizes = [8, 32], strides = [1, 1]} : vector<8x128xf32> to vector<8x32xf32>
    %cst_55 = arith.constant 5.000000e-01 : f32
    %145 = vector.broadcast %cst_55 : f32 to vector<8x32xf32>
    %146 = arith.mulf %145, %144 : vector<8x32xf32>
    %cst_56 = arith.constant 5.000000e-01 : f32
    %147 = vector.broadcast %cst_56 : f32 to vector<8x32xf32>
    %148 = arith.addf %146, %147 : vector<8x32xf32>
    %149 = arith.mulf %142, %122 : vector<8x32xf32>
    %150 = arith.mulf %137, %143 : vector<8x32xf32>
    %151 = arith.addf %149, %150 : vector<8x32xf32>
    %152 = math.tanh %151 : vector<8x32xf32>
    %153 = arith.mulf %148, %152 : vector<8x32xf32>
    %cst_57 = arith.constant 0.000000e+00 : f32
    %154 = vector.broadcast %cst_57 : f32 to vector<8x32xf32>
    %155 = arith.maximumf %153, %154 : vector<8x32xf32>
    %156 = arith.truncf %155 : vector<8x32xf32> to vector<8x32xbf16>
    %c32 = arith.constant 32 : index
    %c0_58 = arith.constant 0 : index
    %157 = vector.load %arg10[%c32, %c0_58] : memref<64x32xbf16, #tpu.memory_space<vmem>>, vector<8x32xbf16>
    tpu.vector_store %arg10[%c32, %c0_58], %156 {strides = array<i32>} : memref<64x32xbf16, #tpu.memory_space<vmem>>, vector<8x32xbf16>,
    %158 = arith.truncf %153 : vector<8x32xf32> to vector<8x32xbf16>
    %cst_59 = arith.constant dense<0.000000e+00> : vector<8x128xf32>
    %159 = tpu.matmul %158, %14, %cst_59 {dimension_numbers = #tpu.dot_dimension_numbers<[1], [0], [0], [1], [0, 0, 1, 1], [], []>} : vector<8x32xbf16>, vector<32x128xbf16>, vector<8x128xf32> -> vector<8x128xf32>
    %160 = arith.addf %13, %159 : vector<8x128xf32>
    %161 = math.tanh %160 : vector<8x128xf32>
    %162 = vector.extract_strided_slice %161 {offsets = [0, 0], sizes = [8, 32], strides = [1, 1]} : vector<8x128xf32> to vector<8x32xf32>
    %cst_60 = arith.constant 5.000000e-01 : f32
    %163 = vector.broadcast %cst_60 : f32 to vector<8x32xf32>
    %164 = arith.mulf %163, %162 : vector<8x32xf32>
    %cst_61 = arith.constant 5.000000e-01 : f32
    %165 = vector.broadcast %cst_61 : f32 to vector<8x32xf32>
    %166 = arith.addf %164, %165 : vector<8x32xf32>
    %167 = vector.extract_strided_slice %161 {offsets = [0, 32], sizes = [8, 32], strides = [1, 1]} : vector<8x128xf32> to vector<8x32xf32>
    %cst_62 = arith.constant 5.000000e-01 : f32
    %168 = vector.broadcast %cst_62 : f32 to vector<8x32xf32>
    %169 = arith.mulf %168, %167 : vector<8x32xf32>
    %cst_63 = arith.constant 5.000000e-01 : f32
    %170 = vector.broadcast %cst_63 : f32 to vector<8x32xf32>
    %171 = arith.addf %169, %170 : vector<8x32xf32>
    %172 = vector.extract_strided_slice %161 {offsets = [0, 64], sizes = [8, 32], strides = [1, 1]} : vector<8x128xf32> to vector<8x32xf32>
    %173 = vector.extract_strided_slice %161 {offsets = [0, 96], sizes = [8, 32], strides = [1, 1]} : vector<8x128xf32> to vector<8x32xf32>
    %cst_64 = arith.constant 5.000000e-01 : f32
    %174 = vector.broadcast %cst_64 : f32 to vector<8x32xf32>
    %175 = arith.mulf %174, %173 : vector<8x32xf32>
    %cst_65 = arith.constant 5.000000e-01 : f32
    %176 = vector.broadcast %cst_65 : f32 to vector<8x32xf32>
    %177 = arith.addf %175, %176 : vector<8x32xf32>
    %178 = arith.mulf %171, %151 : vector<8x32xf32>
    %179 = arith.mulf %166, %172 : vector<8x32xf32>
    %180 = arith.addf %178, %179 : vector<8x32xf32>
    %181 = math.tanh %180 : vector<8x32xf32>
    %182 = arith.mulf %177, %181 : vector<8x32xf32>
    %cst_66 = arith.constant 0.000000e+00 : f32
    %183 = vector.broadcast %cst_66 : f32 to vector<8x32xf32>
    %184 = arith.maximumf %182, %183 : vector<8x32xf32>
    %185 = arith.truncf %184 : vector<8x32xf32> to vector<8x32xbf16>
    %c40 = arith.constant 40 : index
    %c0_67 = arith.constant 0 : index
    %186 = vector.load %arg10[%c40, %c0_67] : memref<64x32xbf16, #tpu.memory_space<vmem>>, vector<8x32xbf16>
    tpu.vector_store %arg10[%c40, %c0_67], %185 {strides = array<i32>} : memref<64x32xbf16, #tpu.memory_space<vmem>>, vector<8x32xbf16>,
    %187 = arith.truncf %182 : vector<8x32xf32> to vector<8x32xbf16>
    %cst_68 = arith.constant dense<0.000000e+00> : vector<8x128xf32>
    %188 = tpu.matmul %187, %14, %cst_68 {dimension_numbers = #tpu.dot_dimension_numbers<[1], [0], [0], [1], [0, 0, 1, 1], [], []>} : vector<8x32xbf16>, vector<32x128xbf16>, vector<8x128xf32> -> vector<8x128xf32>
    %189 = arith.addf %13, %188 : vector<8x128xf32>
    %190 = math.tanh %189 : vector<8x128xf32>
    %191 = vector.extract_strided_slice %190 {offsets = [0, 0], sizes = [8, 32], strides = [1, 1]} : vector<8x128xf32> to vector<8x32xf32>
    %cst_69 = arith.constant 5.000000e-01 : f32
    %192 = vector.broadcast %cst_69 : f32 to vector<8x32xf32>
    %193 = arith.mulf %192, %191 : vector<8x32xf32>
    %cst_70 = arith.constant 5.000000e-01 : f32
    %194 = vector.broadcast %cst_70 : f32 to vector<8x32xf32>
    %195 = arith.addf %193, %194 : vector<8x32xf32>
    %196 = vector.extract_strided_slice %190 {offsets = [0, 32], sizes = [8, 32], strides = [1, 1]} : vector<8x128xf32> to vector<8x32xf32>
    %cst_71 = arith.constant 5.000000e-01 : f32
    %197 = vector.broadcast %cst_71 : f32 to vector<8x32xf32>
    %198 = arith.mulf %197, %196 : vector<8x32xf32>
    %cst_72 = arith.constant 5.000000e-01 : f32
    %199 = vector.broadcast %cst_72 : f32 to vector<8x32xf32>
    %200 = arith.addf %198, %199 : vector<8x32xf32>
    %201 = vector.extract_strided_slice %190 {offsets = [0, 64], sizes = [8, 32], strides = [1, 1]} : vector<8x128xf32> to vector<8x32xf32>
    %202 = vector.extract_strided_slice %190 {offsets = [0, 96], sizes = [8, 32], strides = [1, 1]} : vector<8x128xf32> to vector<8x32xf32>
    %cst_73 = arith.constant 5.000000e-01 : f32
    %203 = vector.broadcast %cst_73 : f32 to vector<8x32xf32>
    %204 = arith.mulf %203, %202 : vector<8x32xf32>
    %cst_74 = arith.constant 5.000000e-01 : f32
    %205 = vector.broadcast %cst_74 : f32 to vector<8x32xf32>
    %206 = arith.addf %204, %205 : vector<8x32xf32>
    %207 = arith.mulf %200, %180 : vector<8x32xf32>
    %208 = arith.mulf %195, %201 : vector<8x32xf32>
    %209 = arith.addf %207, %208 : vector<8x32xf32>
    %210 = math.tanh %209 : vector<8x32xf32>
    %211 = arith.mulf %206, %210 : vector<8x32xf32>
    %cst_75 = arith.constant 0.000000e+00 : f32
    %212 = vector.broadcast %cst_75 : f32 to vector<8x32xf32>
    %213 = arith.maximumf %211, %212 : vector<8x32xf32>
    %214 = arith.truncf %213 : vector<8x32xf32> to vector<8x32xbf16>
    %c48 = arith.constant 48 : index
    %c0_76 = arith.constant 0 : index
    %215 = vector.load %arg10[%c48, %c0_76] : memref<64x32xbf16, #tpu.memory_space<vmem>>, vector<8x32xbf16>
    tpu.vector_store %arg10[%c48, %c0_76], %214 {strides = array<i32>} : memref<64x32xbf16, #tpu.memory_space<vmem>>, vector<8x32xbf16>,
    %216 = arith.truncf %211 : vector<8x32xf32> to vector<8x32xbf16>
    %cst_77 = arith.constant dense<0.000000e+00> : vector<8x128xf32>
    %217 = tpu.matmul %216, %14, %cst_77 {dimension_numbers = #tpu.dot_dimension_numbers<[1], [0], [0], [1], [0, 0, 1, 1], [], []>} : vector<8x32xbf16>, vector<32x128xbf16>, vector<8x128xf32> -> vector<8x128xf32>
    %218 = arith.addf %13, %217 : vector<8x128xf32>
    %219 = math.tanh %218 : vector<8x128xf32>
    %220 = vector.extract_strided_slice %219 {offsets = [0, 0], sizes = [8, 32], strides = [1, 1]} : vector<8x128xf32> to vector<8x32xf32>
    %cst_78 = arith.constant 5.000000e-01 : f32
    %221 = vector.broadcast %cst_78 : f32 to vector<8x32xf32>
    %222 = arith.mulf %221, %220 : vector<8x32xf32>
    %cst_79 = arith.constant 5.000000e-01 : f32
    %223 = vector.broadcast %cst_79 : f32 to vector<8x32xf32>
    %224 = arith.addf %222, %223 : vector<8x32xf32>
    %225 = vector.extract_strided_slice %219 {offsets = [0, 32], sizes = [8, 32], strides = [1, 1]} : vector<8x128xf32> to vector<8x32xf32>
    %cst_80 = arith.constant 5.000000e-01 : f32
    %226 = vector.broadcast %cst_80 : f32 to vector<8x32xf32>
    %227 = arith.mulf %226, %225 : vector<8x32xf32>
    %cst_81 = arith.constant 5.000000e-01 : f32
    %228 = vector.broadcast %cst_81 : f32 to vector<8x32xf32>
    %229 = arith.addf %227, %228 : vector<8x32xf32>
    %230 = vector.extract_strided_slice %219 {offsets = [0, 64], sizes = [8, 32], strides = [1, 1]} : vector<8x128xf32> to vector<8x32xf32>
    %231 = vector.extract_strided_slice %219 {offsets = [0, 96], sizes = [8, 32], strides = [1, 1]} : vector<8x128xf32> to vector<8x32xf32>
    %cst_82 = arith.constant 5.000000e-01 : f32
    %232 = vector.broadcast %cst_82 : f32 to vector<8x32xf32>
    %233 = arith.mulf %232, %231 : vector<8x32xf32>
    %cst_83 = arith.constant 5.000000e-01 : f32
    %234 = vector.broadcast %cst_83 : f32 to vector<8x32xf32>
    %235 = arith.addf %233, %234 : vector<8x32xf32>
    %236 = arith.mulf %229, %209 : vector<8x32xf32>
    %237 = arith.mulf %224, %230 : vector<8x32xf32>
    %238 = arith.addf %236, %237 : vector<8x32xf32>
    %239 = math.tanh %238 : vector<8x32xf32>
    %240 = arith.mulf %235, %239 : vector<8x32xf32>
    %cst_84 = arith.constant 0.000000e+00 : f32
    %241 = vector.broadcast %cst_84 : f32 to vector<8x32xf32>
    %242 = arith.maximumf %240, %241 : vector<8x32xf32>
    %243 = arith.truncf %242 : vector<8x32xf32> to vector<8x32xbf16>
    %c56 = arith.constant 56 : index
    %c0_85 = arith.constant 0 : index
    %244 = vector.load %arg10[%c56, %c0_85] : memref<64x32xbf16, #tpu.memory_space<vmem>>, vector<8x32xbf16>
    tpu.vector_store %arg10[%c56, %c0_85], %243 {strides = array<i32>} : memref<64x32xbf16, #tpu.memory_space<vmem>>, vector<8x32xbf16>,
    %c0_86 = arith.constant 0 : index
    %c0_87 = arith.constant 0 : index
    %245 = vector.load %arg10[%c0_86, %c0_87] : memref<64x32xbf16, #tpu.memory_space<vmem>>, vector<64x32xbf16>
    %c0_88 = arith.constant 0 : index
    %c0_89 = arith.constant 0 : index
    %246 = vector.load %arg7[%c0_88, %c0_89] : memref<32x128xbf16, #tpu.memory_space<vmem>>, vector<32x128xbf16>
    %cst_90 = arith.constant dense<0.000000e+00> : vector<64x128xf32>
    %247 = tpu.matmul %245, %246, %cst_90 {dimension_numbers = #tpu.dot_dimension_numbers<[1], [0], [0], [1], [0, 0, 1, 1], [], []>} : vector<64x32xbf16>, vector<32x128xbf16>, vector<64x128xf32> -> vector<64x128xf32>
    %c0_91 = arith.constant 0 : index
    %c0_92 = arith.constant 0 : index
    %248 = vector.load %arg8[%c0_91, %c0_92] : memref<1x128xf32, #tpu.memory_space<vmem>>, vector<1x128xf32>
    %249 = vector.broadcast %248 : vector<1x128xf32> to vector<64x128xf32>
    %250 = arith.addf %247, %249 : vector<64x128xf32>
    %251 = vector.extract_strided_slice %250 {offsets = [0, 0], sizes = [8, 128], strides = [1, 1]} : vector<64x128xf32> to vector<8x128xf32>
    %c0_93 = arith.constant 0 : index
    %c0_94 = arith.constant 0 : index
    %252 = vector.load %arg9[%c0_93, %c0_94] : memref<8x1024xf32, #tpu.memory_space<vmem>>, vector<8x128xf32>
    tpu.vector_store %arg9[%c0_93, %c0_94], %251 {strides = array<i32>} : memref<8x1024xf32, #tpu.memory_space<vmem>>, vector<8x128xf32>,
    %253 = vector.extract_strided_slice %250 {offsets = [8, 0], sizes = [8, 128], strides = [1, 1]} : vector<64x128xf32> to vector<8x128xf32>
    %c0_95 = arith.constant 0 : index
    %c128 = arith.constant 128 : index
    %254 = vector.load %arg9[%c0_95, %c128] : memref<8x1024xf32, #tpu.memory_space<vmem>>, vector<8x128xf32>
    tpu.vector_store %arg9[%c0_95, %c128], %253 {strides = array<i32>} : memref<8x1024xf32, #tpu.memory_space<vmem>>, vector<8x128xf32>,
    %255 = vector.extract_strided_slice %250 {offsets = [16, 0], sizes = [8, 128], strides = [1, 1]} : vector<64x128xf32> to vector<8x128xf32>
    %c0_96 = arith.constant 0 : index
    %c256 = arith.constant 256 : index
    %256 = vector.load %arg9[%c0_96, %c256] : memref<8x1024xf32, #tpu.memory_space<vmem>>, vector<8x128xf32>
    tpu.vector_store %arg9[%c0_96, %c256], %255 {strides = array<i32>} : memref<8x1024xf32, #tpu.memory_space<vmem>>, vector<8x128xf32>,
    %257 = vector.extract_strided_slice %250 {offsets = [24, 0], sizes = [8, 128], strides = [1, 1]} : vector<64x128xf32> to vector<8x128xf32>
    %c0_97 = arith.constant 0 : index
    %c384 = arith.constant 384 : index
    %258 = vector.load %arg9[%c0_97, %c384] : memref<8x1024xf32, #tpu.memory_space<vmem>>, vector<8x128xf32>
    tpu.vector_store %arg9[%c0_97, %c384], %257 {strides = array<i32>} : memref<8x1024xf32, #tpu.memory_space<vmem>>, vector<8x128xf32>,
    %259 = vector.extract_strided_slice %250 {offsets = [32, 0], sizes = [8, 128], strides = [1, 1]} : vector<64x128xf32> to vector<8x128xf32>
    %c0_98 = arith.constant 0 : index
    %c512 = arith.constant 512 : index
    %260 = vector.load %arg9[%c0_98, %c512] : memref<8x1024xf32, #tpu.memory_space<vmem>>, vector<8x128xf32>
    tpu.vector_store %arg9[%c0_98, %c512], %259 {strides = array<i32>} : memref<8x1024xf32, #tpu.memory_space<vmem>>, vector<8x128xf32>,
    %261 = vector.extract_strided_slice %250 {offsets = [40, 0], sizes = [8, 128], strides = [1, 1]} : vector<64x128xf32> to vector<8x128xf32>
    %c0_99 = arith.constant 0 : index
    %c640 = arith.constant 640 : index
    %262 = vector.load %arg9[%c0_99, %c640] : memref<8x1024xf32, #tpu.memory_space<vmem>>, vector<8x128xf32>
    tpu.vector_store %arg9[%c0_99, %c640], %261 {strides = array<i32>} : memref<8x1024xf32, #tpu.memory_space<vmem>>, vector<8x128xf32>,
    %263 = vector.extract_strided_slice %250 {offsets = [48, 0], sizes = [8, 128], strides = [1, 1]} : vector<64x128xf32> to vector<8x128xf32>
    %c0_100 = arith.constant 0 : index
    %c768 = arith.constant 768 : index
    %264 = vector.load %arg9[%c0_100, %c768] : memref<8x1024xf32, #tpu.memory_space<vmem>>, vector<8x128xf32>
    tpu.vector_store %arg9[%c0_100, %c768], %263 {strides = array<i32>} : memref<8x1024xf32, #tpu.memory_space<vmem>>, vector<8x128xf32>,
    %265 = vector.extract_strided_slice %250 {offsets = [56, 0], sizes = [8, 128], strides = [1, 1]} : vector<64x128xf32> to vector<8x128xf32>
    %c0_101 = arith.constant 0 : index
    %c896 = arith.constant 896 : index
    %266 = vector.load %arg9[%c0_101, %c896] : memref<8x1024xf32, #tpu.memory_space<vmem>>, vector<8x128xf32>
    tpu.vector_store %arg9[%c0_101, %c896], %265 {strides = array<i32>} : memref<8x1024xf32, #tpu.memory_space<vmem>>, vector<8x128xf32>,
    return
  }
  func.func @transform_0(%arg0: i32) -> (i32, i32) {
    %c0_i32 = arith.constant 0 : i32
    %c0_i32_0 = arith.constant 0 : i32
    return %arg0, %c0_i32 : i32, i32
  }
  func.func @transform_1(%arg0: i32) -> (i32, i32) {
    %c0_i32 = arith.constant 0 : i32
    %c0_i32_0 = arith.constant 0 : i32
    %c0_i32_1 = arith.constant 0 : i32
    return %c0_i32, %c0_i32_0 : i32, i32
  }
  func.func @transform_2(%arg0: i32) -> (i32, i32) {
    %c0_i32 = arith.constant 0 : i32
    %c0_i32_0 = arith.constant 0 : i32
    %c0_i32_1 = arith.constant 0 : i32
    return %c0_i32, %c0_i32_0 : i32, i32
  }
  func.func @transform_3(%arg0: i32) -> (i32, i32) {
    %c0_i32 = arith.constant 0 : i32
    %c0_i32_0 = arith.constant 0 : i32
    %c0_i32_1 = arith.constant 0 : i32
    return %c0_i32, %c0_i32_0 : i32, i32
  }
  func.func @transform_4(%arg0: i32) -> (i32, i32) {
    %c0_i32 = arith.constant 0 : i32
    %c0_i32_0 = arith.constant 0 : i32
    %c0_i32_1 = arith.constant 0 : i32
    return %c0_i32, %c0_i32_0 : i32, i32
  }
  func.func @transform_5(%arg0: i32) -> (i32, i32) {
    %c0_i32 = arith.constant 0 : i32
    %c0_i32_0 = arith.constant 0 : i32
    %c0_i32_1 = arith.constant 0 : i32
    return %c0_i32, %c0_i32_0 : i32, i32
  }
  func.func @transform_6(%arg0: i32) -> (i32, i32) {
    %c0_i32 = arith.constant 0 : i32
    %c0_i32_0 = arith.constant 0 : i32
    %c0_i32_1 = arith.constant 0 : i32
    return %c0_i32, %c0_i32_0 : i32, i32
  }
  func.func @transform_7(%arg0: i32) -> (i32, i32) {
    %c0_i32 = arith.constant 0 : i32
    %c0_i32_0 = arith.constant 0 : i32
    %c0_i32_1 = arith.constant 0 : i32
    return %c0_i32, %c0_i32_0 : i32, i32
  }
  func.func @transform_8(%arg0: i32) -> (i32, i32) {
    %c0_i32 = arith.constant 0 : i32
    %c0_i32_0 = arith.constant 0 : i32
    return %arg0, %c0_i32 : i32, i32
  }
}

</mosaic_0001>

<llo_original>
// kernel: tpu_custom_call.1
$region0: #{tpu_custom_call.1}
  #allocation0 [shape = 'u32[]', space=smem, size = 0x4, offset = 0x4, fixed_abs, tag = 'smem constant byte address 0x4 - core index']
  #allocation1 [shape = 'u32[72,128]{1,0:T(1,128)}', space=vmem, size = 0x9000, scoped, tag = 'internal scratch']
  #allocation2 [shape = 'bf16[64,32]{1,0:T(8,128)(2,1)}', space=vmem, size = 0x4000, scoped, tag = 'scratch operand']
  %s0 = inlined_call_operand.hbm [shape: bf16[8,16], index: 0, kind: input, shape index: {}]
  %s1 = inlined_call_operand.hbm [shape: bf16[16,32], index: 1, kind: input, shape index: {}]
  %s2 = inlined_call_operand.vmem [shape: f32[1,32], index: 2, kind: input, shape index: {}]
  %s3 = inlined_call_operand.hbm [shape: bf16[32,128], index: 3, kind: input, shape index: {}]
  %s4 = inlined_call_operand.vmem [shape: f32[1,128], index: 4, kind: input, shape index: {}]
  %s5 = inlined_call_operand.hbm [shape: bf16[32,128], index: 5, kind: input, shape index: {}]
  %s6 = inlined_call_operand.hbm [shape: bf16[32,128], index: 6, kind: input, shape index: {}]
  %s7 = inlined_call_operand.vmem [shape: f32[1,128], index: 7, kind: input, shape index: {}]
  %s8 = inlined_call_operand.hbm [shape: f32[8,1024], index: 8, kind: output, shape index: {}]
  %s9 = sld [smem:[#allocation0]]
  $region62: #{tpu_custom_call.1} parent=0
    _
  %s11 = ssub.s32 1, %s9
  %s12 = scalar_select 0, %s11, %s9
  $region1: #{tpu_custom_call.1} parent=0
    #allocation3 [shape = 'u8[2048]{0}', space=vmem, size = 0x800, scoped, tag = 'input window, operand 0, single buffered']
    #allocation4 [shape = 's32[1]{0}', space=sflag, size = 0x4, scoped, tag = 'scoped memory for tpu_custom_call.1']
    #allocation5 [shape = 's32[1]{0}', space=sflag, size = 0x4, scoped, tag = 'scoped memory for tpu_custom_call.1']
    #allocation6 [shape = 'u8[4096]{0}', space=vmem, size = 0x1000, scoped, tag = 'input window, operand 1, single buffered']
    #allocation7 [shape = 's32[1]{0}', space=sflag, size = 0x4, scoped, tag = 'scoped memory for tpu_custom_call.1']
    #allocation8 [shape = 'u8[8192]{0}', space=vmem, size = 0x2000, scoped, tag = 'input window, operand 3, single buffered']
    #allocation9 [shape = 'u8[8192]{0}', space=vmem, size = 0x2000, scoped, tag = 'input window, operand 5, single buffered']
    #allocation10 [shape = 's32[1]{0}', space=sflag, size = 0x4, scoped, tag = 'scoped memory for tpu_custom_call.1']
    #allocation11 [shape = 'u8[8192]{0}', space=vmem, size = 0x2000, scoped, tag = 'input window, operand 6, single buffered']
    #allocation12 [shape = 'u8[32768]{0}', space=vmem, size = 0x8000, scoped, tag = 'output window, operand 0, single buffered']
    %13 = vsyncpa [#allocation4], 0
    %14 = vsyncpa [#allocation7], 0
    %15 = vsyncpa [#allocation10], 0
    %16 = vsyncpa [#allocation5], 0
    // Predicated region
    $region2: #{tpu_custom_call.1} parent=1 // pred_check
      _
    $region3: #{tpu_custom_call.1} parent=1 // pred_check_branch
      %18 = sbr.rel (0) target = $region5
    $region4: #{tpu_custom_call.1} parent=1 // pred_region
      %20 = vsyncadd [#allocation4], 0
      %s22 = sshll.u32 %s0, 4
      %s23 = int_to_ptr.hbm [resolvable:$true] %s22
      %s24 = sshll.u32 [#allocation3], 4
      %s25 = int_to_ptr.vmem [resolvable:$true] %s24
      %27 = dma.hbm_to_vmem [thread:$0]  %s23, 64, %s25, [#allocation4]
    $region5: #{tpu_custom_call.1} parent=1 // pred_fallthru
      _
    // Predicated region
    $region6: #{tpu_custom_call.1} parent=1 // pred_check
      _
    $region7: #{tpu_custom_call.1} parent=1 // pred_check_branch
      %29 = sbr.rel (0) target = $region9
    $region8: #{tpu_custom_call.1} parent=1 // pred_region
      %31 = vsyncadd [#allocation7], 0
      %s32 = sshll.u32 %s1, 4
      %s33 = int_to_ptr.hbm [resolvable:$true] %s32
      %s34 = sshll.u32 [#allocation6], 4
      %s35 = int_to_ptr.vmem [resolvable:$true] %s34
      %40 = dma.hbm_to_vmem [thread:$0]  %s33, 128, %s35, [#allocation7], 64, 64, 4
    $region9: #{tpu_custom_call.1} parent=1 // pred_fallthru
      _
    // Predicated region
    $region10: #{tpu_custom_call.1} parent=1 // pred_check
      _
    $region11: #{tpu_custom_call.1} parent=1 // pred_check_branch
      %42 = sbr.rel (0) target = $region13
    $region12: #{tpu_custom_call.1} parent=1 // pred_region
      _
    $region13: #{tpu_custom_call.1} parent=1 // pred_fallthru
      _
    // Predicated region
    $region14: #{tpu_custom_call.1} parent=1 // pred_check
      _
    $region15: #{tpu_custom_call.1} parent=1 // pred_check_branch
      %44 = sbr.rel (0) target = $region17
    $region16: #{tpu_custom_call.1} parent=1 // pred_region
      %46 = vsyncadd [#allocation7], 0
      %s47 = sshll.u32 %s3, 4
      %s48 = int_to_ptr.hbm [resolvable:$true] %s47
      %s49 = sshll.u32 [#allocation8], 4
      %s50 = int_to_ptr.vmem [resolvable:$true] %s49
      %55 = dma.hbm_to_vmem [thread:$0]  %s48, 256, %s50, [#allocation7], 64, 64, 4
    $region17: #{tpu_custom_call.1} parent=1 // pred_fallthru
      _
    // Predicated region
    $region18: #{tpu_custom_call.1} parent=1 // pred_check
      _
    $region19: #{tpu_custom_call.1} parent=1 // pred_check_branch
      %57 = sbr.rel (0) target = $region21
    $region20: #{tpu_custom_call.1} parent=1 // pred_region
      _
    $region21: #{tpu_custom_call.1} parent=1 // pred_fallthru
      _
    // Predicated region
    $region22: #{tpu_custom_call.1} parent=1 // pred_check
      _
    $region23: #{tpu_custom_call.1} parent=1 // pred_check_branch
      %59 = sbr.rel (0) target = $region25
    $region24: #{tpu_custom_call.1} parent=1 // pred_region
      %61 = vsyncadd [#allocation10], 0
      %s62 = sshll.u32 %s5, 4
      %s63 = int_to_ptr.hbm [resolvable:$true] %s62
      %s64 = sshll.u32 [#allocation9], 4
      %s65 = int_to_ptr.vmem [resolvable:$true] %s64
      %70 = dma.hbm_to_vmem [thread:$0]  %s63, 256, %s65, [#allocation10], 64, 64, 4
    $region25: #{tpu_custom_call.1} parent=1 // pred_fallthru
      _
    // Predicated region
    $region26: #{tpu_custom_call.1} parent=1 // pred_check
      _
    $region27: #{tpu_custom_call.1} parent=1 // pred_check_branch
      %72 = sbr.rel (0) target = $region29
    $region28: #{tpu_custom_call.1} parent=1 // pred_region
      %74 = vsyncadd [#allocation10], 0
      %s75 = sshll.u32 %s6, 4
      %s76 = int_to_ptr.hbm [resolvable:$true] %s75
      %s77 = sshll.u32 [#allocation11], 4
      %s78 = int_to_ptr.vmem [resolvable:$true] %s77
      %83 = dma.hbm_to_vmem [thread:$0]  %s76, 256, %s78, [#allocation10], 64, 64, 4
    $region29: #{tpu_custom_call.1} parent=1 // pred_fallthru
      _
    // Predicated region
    $region30: #{tpu_custom_call.1} parent=1 // pred_check
      _
    $region31: #{tpu_custom_call.1} parent=1 // pred_check_branch
      %85 = sbr.rel (0) target = $region33
    $region32: #{tpu_custom_call.1} parent=1 // pred_region
      _
    $region33: #{tpu_custom_call.1} parent=1 // pred_fallthru
      _
    // Predicated region
    $region34: #{tpu_custom_call.1} parent=1 // pred_check
      _
    $region35: #{tpu_custom_call.1} parent=1 // pred_check_branch
      %87 = sbr.rel (0) target = $region37
    $region36: #{tpu_custom_call.1} parent=1 // pred_region
      %89 = dma.done [#allocation4], 64
    $region37: #{tpu_custom_call.1} parent=1 // pred_fallthru
      _
    // Predicated region
    $region38: #{tpu_custom_call.1} parent=1 // pred_check
      _
    $region39: #{tpu_custom_call.1} parent=1 // pred_check_branch
      %91 = sbr.rel (0) target = $region41
    $region40: #{tpu_custom_call.1} parent=1 // pred_region
      %93 = dma.done [#allocation7], 128
    $region41: #{tpu_custom_call.1} parent=1 // pred_fallthru
      _
    // Predicated region
    $region42: #{tpu_custom_call.1} parent=1 // pred_check
      _
    $region43: #{tpu_custom_call.1} parent=1 // pred_check_branch
      %95 = sbr.rel (0) target = $region45
    $region44: #{tpu_custom_call.1} parent=1 // pred_region
      %97 = dma.done [#allocation7], 256
    $region45: #{tpu_custom_call.1} parent=1 // pred_fallthru
      _
    // Predicated region
    $region46: #{tpu_custom_call.1} parent=1 // pred_check
      _
    $region47: #{tpu_custom_call.1} parent=1 // pred_check_branch
      %99 = sbr.rel (0) target = $region49
    $region48: #{tpu_custom_call.1} parent=1 // pred_region
      %101 = dma.done [#allocation10], 256
    $region49: #{tpu_custom_call.1} parent=1 // pred_fallthru
      _
    // Predicated region
    $region50: #{tpu_custom_call.1} parent=1 // pred_check
      _
    $region51: #{tpu_custom_call.1} parent=1 // pred_check_branch
      %103 = sbr.rel (0) target = $region53
    $region52: #{tpu_custom_call.1} parent=1 // pred_region
      %105 = dma.done [#allocation10], 256
    $region53: #{tpu_custom_call.1} parent=1 // pred_fallthru
      _
    %v107 = vld [vmem:[#allocation3] sm:$0xf]
    %v108 = vld [vmem:[#allocation6] sm:$0xf]
    %v109 = vld [vmem:[#allocation6 + $0x4] sm:$0xf]
    %v110 = vld [vmem:[%s2] sm:$0x1]
    %v112 = vperm.slane %v110, 0
    %v116 = vunpack.c.l.b16 %v108
    %v117 = vunpack.c.l.b16 %v109
    %v118 = vpack.c.b16 %v117, %v116
    %vm120 = vcmask 130048
    %v122 = vsel %vm120, %v107, 0
    %124 = vmatpush.bf16.msra.mxu0 0
    %125 = vmatpush.bf16.msra.mxu0 0
    %126 = vmatpush.bf16.msra.mxu0 0
    %127 = vmatpush.bf16.msra.mxu0 0
    %128 = vmatpush.bf16.msra.mxu0 0
    %129 = vmatpush.bf16.msra.mxu0 0
    %130 = vmatpush.bf16.msra.mxu0 0
    %131 = vmatpush.bf16.msra.mxu0 %v118
    %132 = vmatmul.bf16.gmra.mxu0 %v122
    %v133 = vpop.f32.mrf.mxu0
    %v134 = vadd.f32 %v112, %v133
    %v135 = vpop.f32.mrf.mxu0
    %136 = vdwg.mxu0
    %v137 = vmax.f32 %v134, 0.0
    %v138 = vpack.c.bf16 %v137, %v137
    %v139 = vld [vmem:[#allocation8] sm:$0xf]
    %v140 = vld [vmem:[#allocation8 + $0x4] sm:$0xf]
    %v141 = vld [vmem:[#allocation8 + $0x8] sm:$0xf]
    %v142 = vld [vmem:[#allocation8 + $0xc] sm:$0xf]
    %v143 = vld [vmem:[%s4] sm:$0x1]
    %v145 = vperm.slane %v143, 0
    %v151 = vunpack.c.l.b16 %v139
    %v152 = vunpack.c.l.b16 %v140
    %v153 = vunpack.c.l.b16 %v141
    %v154 = vunpack.c.l.b16 %v142
    %v155 = vpack.c.b16 %v152, %v151
    %v156 = vpack.c.b16 %v154, %v153
    %vm159 = vcmask 261120
    %v161 = vsel %vm159, %v138, 0
    %163 = vmatpush.bf16.msra.mxu0 0
    %164 = vmatpush.bf16.msra.mxu0 0
    %165 = vmatpush.bf16.msra.mxu0 0
    %166 = vmatpush.bf16.msra.mxu0 0
    %167 = vmatpush.bf16.msra.mxu0 0
    %168 = vmatpush.bf16.msra.mxu0 0
    %169 = vmatpush.bf16.msra.mxu0 %v156
    %170 = vmatpush.bf16.msra.mxu0 %v155
    %171 = vmatmul.bf16.gmra.mxu0 %v161
    %v172 = vpop.f32.mrf.mxu0
    %v173 = vadd.f32 %v145, %v172
    %v174 = vpop.f32.mrf.mxu0
    %175 = vdwg.mxu0
    %v176 = vld [vmem:[#allocation9] sm:$0xf]
    %v177 = vld [vmem:[#allocation9 + $0x4] sm:$0xf]
    %v178 = vld [vmem:[#allocation9 + $0x8] sm:$0xf]
    %v179 = vld [vmem:[#allocation9 + $0xc] sm:$0xf]
    %v180 = vtanh.pop %v173
    %v181 = vmul.f32 %v180, 0.5
    %v182 = vadd.f32 %v181, 0.5
    %v183 = vmul.f32 %v182, 0.0
    %185 = vrot.lane.b32.xlu0 %v180, 64
    %v186 = vpop.permute.xlu0 %185
    %v188 = vmul.f32 %v182, %v186
    %190 = vrot.lane.b32.xlu0 %v188, 32
    %v191 = vpop.permute.xlu0 %190
    %v193 = vadd.f32 %v183, %v191
    %v194 = vtanh.pop %v193
    %196 = vrot.lane.b32.xlu0 %v194, 64
    %v197 = vpop.permute.xlu0 %196
    %v199 = vmul.f32 %v182, %v197
    %v200 = vmax.f32 %v199, 0.0
    %v201 = vpack.c.bf16 %v200, %v200
    %203 = vrot.lane.b32.xlu0 %v201, 32
    %v204 = vpop.permute.xlu0 %203
    %vm206 = vcmask 257024
    %207 = vst.msk [vmem:[#allocation2] sm:$0xf] %vm206, %v204
    %v208 = vpack.c.bf16 %v199, %v199
    %210 = vrot.lane.b32.xlu0 %v208, 32
    %v211 = vpop.permute.xlu0 %210
    %v216 = vunpack.c.l.b16 %v176
    %v217 = vunpack.c.l.b16 %v177
    %v218 = vunpack.c.l.b16 %v178
    %v219 = vunpack.c.l.b16 %v179
    %v220 = vpack.c.b16 %v217, %v216
    %v221 = vpack.c.b16 %v219, %v218
    %v225 = vsel %vm159, %v211, 0
    %227 = vmatpush.bf16.msra.mxu0 0
    %228 = vmatpush.bf16.msra.mxu0 0
    %229 = vmatpush.bf16.msra.mxu0 0
    %230 = vmatpush.bf16.msra.mxu0 0
    %231 = vmatpush.bf16.msra.mxu0 0
    %232 = vmatpush.bf16.msra.mxu0 0
    %233 = vmatpush.bf16.msra.mxu0 %v221
    %234 = vmatpush.bf16.msra.mxu0 %v220
    %235 = vmatmul.bf16.gmra.mxu0 %v225
    %v236 = vpop.f32.mrf.mxu0
    %v237 = vadd.f32 0.0, %v236
    %v238 = vpop.f32.mrf.mxu0
    %239 = vdwg.mxu0
    %v240 = vadd.f32 %v173, %v237
    %v241 = vtanh.pop %v240
    %v242 = vmul.f32 %v241, 0.5
    %v243 = vadd.f32 %v242, 0.5
    %v244 = vmul.f32 %v243, %v193
    %246 = vrot.lane.b32.xlu0 %v241, 64
    %v247 = vpop.permute.xlu0 %246
    %v249 = vmul.f32 %v243, %v247
    %251 = vrot.lane.b32.xlu0 %v249, 32
    %v252 = vpop.permute.xlu0 %251
    %v254 = vadd.f32 %v244, %v252
    %v255 = vtanh.pop %v254
    %257 = vrot.lane.b32.xlu0 %v255, 64
    %v258 = vpop.permute.xlu0 %257
    %v260 = vmul.f32 %v243, %v258
    %v261 = vmax.f32 %v260, 0.0
    %v262 = vpack.c.bf16 %v261, %v261
    %264 = vrot.lane.b32.xlu0 %v262, 32
    %v265 = vpop.permute.xlu0 %264
    %267 = vst.msk [vmem:[#allocation2 + $0x4] sm:$0xf] %vm206, %v265
    %v268 = vpack.c.bf16 %v260, %v260
    %270 = vrot.lane.b32.xlu0 %v268, 32
    %v271 = vpop.permute.xlu0 %270
    %v273 = vsel %vm159, %v271, 0
    %275 = vmatpush.bf16.msra.mxu0 0
    %276 = vmatpush.bf16.msra.mxu0 0
    %277 = vmatpush.bf16.msra.mxu0 0
    %278 = vmatpush.bf16.msra.mxu0 0
    %279 = vmatpush.bf16.msra.mxu0 0
    %280 = vmatpush.bf16.msra.mxu0 0
    %281 = vmatpush.bf16.msra.mxu0 %v221
    %282 = vmatpush.bf16.msra.mxu0 %v220
    %283 = vmatmul.bf16.gmra.mxu0 %v273
    %v284 = vpop.f32.mrf.mxu0
    %v285 = vadd.f32 0.0, %v284
    %v286 = vpop.f32.mrf.mxu0
    %287 = vdwg.mxu0
    %v288 = vadd.f32 %v173, %v285
    %v289 = vtanh.pop %v288
    %v290 = vmul.f32 %v289, 0.5
    %v291 = vadd.f32 %v290, 0.5
    %v292 = vmul.f32 %v291, %v254
    %294 = vrot.lane.b32.xlu0 %v289, 64
    %v295 = vpop.permute.xlu0 %294
    %v297 = vmul.f32 %v291, %v295
    %299 = vrot.lane.b32.xlu0 %v297, 32
    %v300 = vpop.permute.xlu0 %299
    %v302 = vadd.f32 %v292, %v300
    %v303 = vtanh.pop %v302
    %305 = vrot.lane.b32.xlu0 %v303, 64
    %v306 = vpop.permute.xlu0 %305
    %v308 = vmul.f32 %v291, %v306
    %v309 = vmax.f32 %v308, 0.0
    %v310 = vpack.c.bf16 %v309, %v309
    %312 = vrot.lane.b32.xlu0 %v310, 32
    %v313 = vpop.permute.xlu0 %312
    %315 = vst.msk [vmem:[#allocation2 + $0x8] sm:$0xf] %vm206, %v313
    %v316 = vpack.c.bf16 %v308, %v308
    %318 = vrot.lane.b32.xlu0 %v316, 32
    %v319 = vpop.permute.xlu0 %318
    %v321 = vsel %vm159, %v319, 0
    %323 = vmatpush.bf16.msra.mxu0 0
    %324 = vmatpush.bf16.msra.mxu0 0
    %325 = vmatpush.bf16.msra.mxu0 0
    %326 = vmatpush.bf16.msra.mxu0 0
    %327 = vmatpush.bf16.msra.mxu0 0
    %328 = vmatpush.bf16.msra.mxu0 0
    %329 = vmatpush.bf16.msra.mxu0 %v221
    %330 = vmatpush.bf16.msra.mxu0 %v220
    %331 = vmatmul.bf16.gmra.mxu0 %v321
    %v332 = vpop.f32.mrf.mxu0
    %v333 = vadd.f32 0.0, %v332
    %v334 = vpop.f32.mrf.mxu0
    %335 = vdwg.mxu0
    %v336 = vadd.f32 %v173, %v333
    %v337 = vtanh.pop %v336
    %v338 = vmul.f32 %v337, 0.5
    %v339 = vadd.f32 %v338, 0.5
    %v340 = vmul.f32 %v339, %v302
    %342 = vrot.lane.b32.xlu0 %v337, 64
    %v343 = vpop.permute.xlu0 %342
    %v345 = vmul.f32 %v339, %v343
    %347 = vrot.lane.b32.xlu0 %v345, 32
    %v348 = vpop.permute.xlu0 %347
    %v350 = vadd.f32 %v340, %v348
    %v351 = vtanh.pop %v350
    %353 = vrot.lane.b32.xlu0 %v351, 64
    %v354 = vpop.permute.xlu0 %353
    %v356 = vmul.f32 %v339, %v354
    %v357 = vmax.f32 %v356, 0.0
    %v358 = vpack.c.bf16 %v357, %v357
    %360 = vrot.lane.b32.xlu0 %v358, 32
    %v361 = vpop.permute.xlu0 %360
    %363 = vst.msk [vmem:[#allocation2 + $0xc] sm:$0xf] %vm206, %v361
    %v364 = vpack.c.bf16 %v356, %v356
    %366 = vrot.lane.b32.xlu0 %v364, 32
    %v367 = vpop.permute.xlu0 %366
    %v369 = vsel %vm159, %v367, 0
    %371 = vmatpush.bf16.msra.mxu0 0
    %372 = vmatpush.bf16.msra.mxu0 0
    %373 = vmatpush.bf16.msra.mxu0 0
    %374 = vmatpush.bf16.msra.mxu0 0
    %375 = vmatpush.bf16.msra.mxu0 0
    %376 = vmatpush.bf16.msra.mxu0 0
    %377 = vmatpush.bf16.msra.mxu0 %v221
    %378 = vmatpush.bf16.msra.mxu0 %v220
    %379 = vmatmul.bf16.gmra.mxu0 %v369
    %v380 = vpop.f32.mrf.mxu0
    %v381 = vadd.f32 0.0, %v380
    %v382 = vpop.f32.mrf.mxu0
    %383 = vdwg.mxu0
    %v384 = vadd.f32 %v173, %v381
    %v385 = vtanh.pop %v384
    %v386 = vmul.f32 %v385, 0.5
    %v387 = vadd.f32 %v386, 0.5
    %v388 = vmul.f32 %v387, %v350
    %390 = vrot.lane.b32.xlu0 %v385, 64
    %v391 = vpop.permute.xlu0 %390
    %v393 = vmul.f32 %v387, %v391
    %395 = vrot.lane.b32.xlu0 %v393, 32
    %v396 = vpop.permute.xlu0 %395
    %v398 = vadd.f32 %v388, %v396
    %v399 = vtanh.pop %v398
    %401 = vrot.lane.b32.xlu0 %v399, 64
    %v402 = vpop.permute.xlu0 %401
    %v404 = vmul.f32 %v387, %v402
    %v405 = vmax.f32 %v404, 0.0
    %v406 = vpack.c.bf16 %v405, %v405
    %408 = vrot.lane.b32.xlu0 %v406, 32
    %v409 = vpop.permute.xlu0 %408
    %411 = vst.msk [vmem:[#allocation2 + $0x10] sm:$0xf] %vm206, %v409
    %v412 = vpack.c.bf16 %v404, %v404
    %414 = vrot.lane.b32.xlu0 %v412, 32
    %v415 = vpop.permute.xlu0 %414
    %v417 = vsel %vm159, %v415, 0
    %419 = vmatpush.bf16.msra.mxu0 0
    %420 = vmatpush.bf16.msra.mxu0 0
    %421 = vmatpush.bf16.msra.mxu0 0
    %422 = vmatpush.bf16.msra.mxu0 0
    %423 = vmatpush.bf16.msra.mxu0 0
    %424 = vmatpush.bf16.msra.mxu0 0
    %425 = vmatpush.bf16.msra.mxu0 %v221
    %426 = vmatpush.bf16.msra.mxu0 %v220
    %427 = vmatmul.bf16.gmra.mxu0 %v417
    %v428 = vpop.f32.mrf.mxu0
    %v429 = vadd.f32 0.0, %v428
    %v430 = vpop.f32.mrf.mxu0
    %431 = vdwg.mxu0
    %v432 = vadd.f32 %v173, %v429
    %v433 = vtanh.pop %v432
    %v434 = vmul.f32 %v433, 0.5
    %v435 = vadd.f32 %v434, 0.5
    %v436 = vmul.f32 %v435, %v398
    %438 = vrot.lane.b32.xlu0 %v433, 64
    %v439 = vpop.permute.xlu0 %438
    %v441 = vmul.f32 %v435, %v439
    %443 = vrot.lane.b32.xlu0 %v441, 32
    %v444 = vpop.permute.xlu0 %443
    %v446 = vadd.f32 %v436, %v444
    %v447 = vtanh.pop %v446
    %449 = vrot.lane.b32.xlu0 %v447, 64
    %v450 = vpop.permute.xlu0 %449
    %v452 = vmul.f32 %v435, %v450
    %v453 = vmax.f32 %v452, 0.0
    %v454 = vpack.c.bf16 %v453, %v453
    %456 = vrot.lane.b32.xlu0 %v454, 32
    %v457 = vpop.permute.xlu0 %456
    %459 = vst.msk [vmem:[#allocation2 + $0x14] sm:$0xf] %vm206, %v457
    %v460 = vpack.c.bf16 %v452, %v452
    %462 = vrot.lane.b32.xlu0 %v460, 32
    %v463 = vpop.permute.xlu0 %462
    %v465 = vsel %vm159, %v463, 0
    %467 = vmatpush.bf16.msra.mxu0 0
    %468 = vmatpush.bf16.msra.mxu0 0
    %469 = vmatpush.bf16.msra.mxu0 0
    %470 = vmatpush.bf16.msra.mxu0 0
    %471 = vmatpush.bf16.msra.mxu0 0
    %472 = vmatpush.bf16.msra.mxu0 0
    %473 = vmatpush.bf16.msra.mxu0 %v221
    %474 = vmatpush.bf16.msra.mxu0 %v220
    %475 = vmatmul.bf16.gmra.mxu0 %v465
    %v476 = vpop.f32.mrf.mxu0
    %v477 = vadd.f32 0.0, %v476
    %v478 = vpop.f32.mrf.mxu0
    %479 = vdwg.mxu0
    %v480 = vadd.f32 %v173, %v477
    %v481 = vtanh.pop %v480
    %v482 = vmul.f32 %v481, 0.5
    %v483 = vadd.f32 %v482, 0.5
    %v484 = vmul.f32 %v483, %v446
    %486 = vrot.lane.b32.xlu0 %v481, 64
    %v487 = vpop.permute.xlu0 %486
    %v489 = vmul.f32 %v483, %v487
    %491 = vrot.lane.b32.xlu0 %v489, 32
    %v492 = vpop.permute.xlu0 %491
    %v494 = vadd.f32 %v484, %v492
    %v495 = vtanh.pop %v494
    %497 = vrot.lane.b32.xlu0 %v495, 64
    %v498 = vpop.permute.xlu0 %497
    %v500 = vmul.f32 %v483, %v498
    %v501 = vmax.f32 %v500, 0.0
    %v502 = vpack.c.bf16 %v501, %v501
    %504 = vrot.lane.b32.xlu0 %v502, 32
    %v505 = vpop.permute.xlu0 %504
    %507 = vst.msk [vmem:[#allocation2 + $0x18] sm:$0xf] %vm206, %v505
    %v508 = vpack.c.bf16 %v500, %v500
    %510 = vrot.lane.b32.xlu0 %v508, 32
    %v511 = vpop.permute.xlu0 %510
    %v513 = vsel %vm159, %v511, 0
    %515 = vmatpush.bf16.msra.mxu0 0
    %516 = vmatpush.bf16.msra.mxu0 0
    %517 = vmatpush.bf16.msra.mxu0 0
    %518 = vmatpush.bf16.msra.mxu0 0
    %519 = vmatpush.bf16.msra.mxu0 0
    %520 = vmatpush.bf16.msra.mxu0 0
    %521 = vmatpush.bf16.msra.mxu0 %v221
    %522 = vmatpush.bf16.msra.mxu0 %v220
    %523 = vmatmul.bf16.gmra.mxu0 %v513
    %v524 = vpop.f32.mrf.mxu0
    %v525 = vadd.f32 0.0, %v524
    %v526 = vpop.f32.mrf.mxu0
    %527 = vdwg.mxu0
    %v528 = vadd.f32 %v173, %v525
    %v529 = vtanh.pop %v528
    %v530 = vmul.f32 %v529, 0.5
    %v531 = vadd.f32 %v530, 0.5
    %v532 = vmul.f32 %v531, %v494
    %534 = vrot.lane.b32.xlu0 %v529, 64
    %v535 = vpop.permute.xlu0 %534
    %v537 = vmul.f32 %v531, %v535
    %539 = vrot.lane.b32.xlu0 %v537, 32
    %v540 = vpop.permute.xlu0 %539
    %v542 = vadd.f32 %v532, %v540
    %v543 = vtanh.pop %v542
    %545 = vrot.lane.b32.xlu0 %v543, 64
    %v546 = vpop.permute.xlu0 %545
    %v548 = vmul.f32 %v531, %v546
    %v549 = vmax.f32 %v548, 0.0
    %v550 = vpack.c.bf16 %v549, %v549
    %552 = vrot.lane.b32.xlu0 %v550, 32
    %v553 = vpop.permute.xlu0 %552
    %555 = vst.msk [vmem:[#allocation2 + $0x1c] sm:$0xf] %vm206, %v553
    %v556 = vld [vmem:[#allocation2] sm:$0xf]
    %v557 = vld [vmem:[#allocation2 + $0x4] sm:$0xf]
    %v558 = vld [vmem:[#allocation2 + $0x8] sm:$0xf]
    %v559 = vld [vmem:[#allocation2 + $0xc] sm:$0xf]
    %v560 = vld [vmem:[#allocation2 + $0x10] sm:$0xf]
    %v561 = vld [vmem:[#allocation2 + $0x14] sm:$0xf]
    %v562 = vld [vmem:[#allocation2 + $0x18] sm:$0xf]
    %v563 = vld [vmem:[#allocation2 + $0x1c] sm:$0xf]
    %v564 = vld [vmem:[#allocation11] sm:$0xf]
    %v565 = vld [vmem:[#allocation11 + $0x4] sm:$0xf]
    %v566 = vld [vmem:[#allocation11 + $0x8] sm:$0xf]
    %v567 = vld [vmem:[#allocation11 + $0xc] sm:$0xf]
    %v568 = vld [vmem:[%s7] sm:$0x1]
    %v570 = vperm.slane %v568, 0
    %v580 = vunpack.c.l.b16 %v556
    %v581 = vunpack.c.l.b16 %v557
    %v582 = vunpack.c.l.b16 %v558
    %v583 = vunpack.c.l.b16 %v559
    %v584 = vunpack.c.l.b16 %v560
    %v585 = vunpack.c.l.b16 %v561
    %v586 = vunpack.c.l.b16 %v562
    %v587 = vunpack.c.l.b16 %v563
    %v588 = vpack.c.b16 %v581, %v580
    %v589 = vpack.c.b16 %v583, %v582
    %v590 = vpack.c.b16 %v585, %v584
    %v591 = vpack.c.b16 %v587, %v586
    %v596 = vunpack.c.l.b16 %v564
    %v597 = vunpack.c.l.b16 %v565
    %v598 = vunpack.c.l.b16 %v566
    %v599 = vunpack.c.l.b16 %v567
    %v600 = vpack.c.b16 %v597, %v596
    %v601 = vpack.c.b16 %v599, %v598
    %v605 = vsel %vm159, %v588, 0
    %v608 = vsel %vm159, %v589, 0
    %v611 = vsel %vm159, %v590, 0
    %v614 = vsel %vm159, %v591, 0
    %616 = vmatpush.bf16.msra.mxu0 0
    %617 = vmatpush.bf16.msra.mxu0 0
    %618 = vmatpush.bf16.msra.mxu0 0
    %619 = vmatpush.bf16.msra.mxu0 0
    %620 = vmatpush.bf16.msra.mxu0 0
    %621 = vmatpush.bf16.msra.mxu0 0
    %622 = vmatpush.bf16.msra.mxu0 %v601
    %623 = vmatpush.bf16.msra.mxu0 %v600
    %624 = vmatmul.bf16.gmra.mxu0 %v605
    %v625 = vpop.f32.mrf.mxu0
    %v626 = vadd.f32 %v570, %v625
    %v627 = vpop.f32.mrf.mxu0
    %v628 = vadd.f32 %v570, %v627
    %629 = vmatmul.bf16.gmra.mxu0 %v608
    %v630 = vpop.f32.mrf.mxu0
    %v631 = vadd.f32 %v570, %v630
    %v632 = vpop.f32.mrf.mxu0
    %v633 = vadd.f32 %v570, %v632
    %634 = vmatmul.bf16.gmra.mxu0 %v611
    %v635 = vpop.f32.mrf.mxu0
    %v636 = vadd.f32 %v570, %v635
    %v637 = vpop.f32.mrf.mxu0
    %v638 = vadd.f32 %v570, %v637
    %639 = vmatmul.bf16.gmra.mxu0 %v614
    %v640 = vpop.f32.mrf.mxu0
    %v641 = vadd.f32 %v570, %v640
    %v642 = vpop.f32.mrf.mxu0
    %v643 = vadd.f32 %v570, %v642
    %644 = vdwg.mxu0
    %645 = vst [vmem:[#allocation12] sm:$0xff] %v626
    %646 = vst [vmem:[#allocation12 + $0x8] sm:$0xff] %v628
    %647 = vst [vmem:[#allocation12 + $0x10] sm:$0xff] %v631
    %648 = vst [vmem:[#allocation12 + $0x18] sm:$0xff] %v633
    %649 = vst [vmem:[#allocation12 + $0x20] sm:$0xff] %v636
    %650 = vst [vmem:[#allocation12 + $0x28] sm:$0xff] %v638
    %651 = vst [vmem:[#allocation12 + $0x30] sm:$0xff] %v641
    %652 = vst [vmem:[#allocation12 + $0x38] sm:$0xff] %v643
    // Predicated region
    $region54: #{tpu_custom_call.1} parent=1 // pred_check
      _
    $region55: #{tpu_custom_call.1} parent=1 // pred_check_branch
      %654 = sbr.rel (0) target = $region57
    $region56: #{tpu_custom_call.1} parent=1 // pred_region
      %656 = vsyncadd [#allocation5], 0
      %s658 = sshll.u32 [#allocation12], 4
      %s659 = int_to_ptr.vmem [resolvable:$true] %s658
      %s660 = sshll.u32 %s8, 4
      %s661 = int_to_ptr.hbm [resolvable:$true] %s660
      %663 = dma.vmem_to_hbm [thread:$0]  %s659, 1024, %s661, [#allocation5]
    $region57: #{tpu_custom_call.1} parent=1 // pred_fallthru
      _
    // Predicated region
    $region58: #{tpu_custom_call.1} parent=1 // pred_check
      _
    $region59: #{tpu_custom_call.1} parent=1 // pred_check_branch
      %665 = sbr.rel (0) target = $region61
    $region60: #{tpu_custom_call.1} parent=1 // pred_region
      %667 = dma.done [#allocation5], 1024
    $region61: #{tpu_custom_call.1} parent=1 // pred_fallthru
      _
    %668 = vsyncpa [#allocation4], 1
    %669 = vsyncpa [#allocation7], 1
    %670 = vsyncpa [#allocation10], 1
    %671 = vsyncpa [#allocation5], 1

</llo_original>
